<compile_context>
chip_gen: v6e
topology: v6e:2x2x1
jax: 0.10.0
libtpu: 0.0.40
codegen_flags: <defaults>
</compile_context>

<pallas_src>
import functools

import jax
import jax.numpy as jnp
from jax import lax
from jax.experimental import pallas as pl
from jax.experimental.pallas import tpu as pltpu


def _round_up(x: int, m: int) -> int:
    return ((x + m - 1) // m) * m


def _bls_neg_kernel(x_ref, out_ref, *, smoothing, n_rows, n_cols, tb, tc,
                    fold_rows, mask_rows, mask_cols):
    """Accumulates sum over the class axis of  logsigmoid(-x) + s*x  per B-block."""
    bi = pl.program_id(0)          # batch-tile index ("parallel")
    ci = pl.program_id(1)          # class-tile index (reduction, last, "arbitrary")

    @pl.when(ci == 0)
    def _init():
        out_ref[...] = jnp.zeros_like(out_ref)

    x = x_ref[...].astype(jnp.float32)                 # (tb, tc), cast in-kernel

    # logsigmoid(-x) = -max(x, 0) - log1p(exp(-|x|))   (numerically stable)
    # TODO(synk): on v7x the exp/log1p pair could run in bf16 for ~2x EUP
    # throughput; kept f32 for exactness across chips.
    ls_neg = -jnp.maximum(x, 0.0) - jnp.log1p(jnp.exp(-jnp.abs(x)))
    loss = ls_neg + smoothing * x

    # Mask ragged tail blocks (trace-time optional -> zero cost when aligned).
    if mask_rows:
        row = lax.broadcasted_iota(jnp.int32, (tb, 1), 0) + bi * tb
        loss = jnp.where(row < n_rows, loss, 0.0)
    if mask_cols:
        col = lax.broadcasted_iota(jnp.int32, (1, tc), 1) + ci * tc
        loss = jnp.where(col < n_cols, loss, 0.0)

    # Fold the tb rows into `fold_rows` sublanes with pure VALU vreg adds
    # (no intra-vreg XLU reduce); accumulate in the resident output block.
    fold = loss.reshape(tb // fold_rows, fold_rows, tc).sum(axis=0)
    out_ref[...] += fold[None, :, :]


def binary_label_smooth_loss_with_logits(inputs: jax.Array,
                                         targets: jax.Array,
                                         smoothing: float = 0.1,
                                         *,
                                         block_b: int = 512,
                                         block_c: int = 2048) -> jax.Array:
    """inputs: (B, C) float logits (any float dtype, e.g. bf16);
    targets: (B,) int class indices. Returns scalar loss."""
    assert 0.0 <= smoothing < 1.0
    B, C = inputs.shape
    itemsize = jnp.dtype(inputs.dtype).itemsize

    # Dtype-aware class tile: each input buffer ~ block_b * block_c * 4 bytes
    # regardless of dtype (bf16 gets a 2x wider tile).
    block_c_eff = block_c * max(1, 4 // itemsize)
    tc = C if C <= block_c_eff else block_c_eff
    if tc != C:
        assert tc % 128 == 0, "class tile must be a multiple of 128"

    # Batch tile: >= 2 tiles on the "parallel" axis when B > 8 (v7x megacore),
    # capped at block_b, multiple of 8 when not full-extent.
    if B <= 8:
        tb = B
    else:
        tb = min(block_b, _round_up(-(-B // 2), 8))
    if tb != B:
        assert tb % 8 == 0, "batch tile must be a multiple of 8"

    nb = -(-B // tb)
    nc = -(-C // tc)
    fold_rows = 8 if tb % 8 == 0 else tb

    kernel = functools.partial(
        _bls_neg_kernel,
        smoothing=float(smoothing), n_rows=B, n_cols=C, tb=tb, tc=tc,
        fold_rows=fold_rows,
        mask_rows=(nb * tb != B), mask_cols=(nc * tc != C))

    cost = pl.CostEstimate(
        flops=6 * B * C,
        transcendentals=2 * B * C,
        bytes_accessed=B * C * itemsize + nb * fold_rows * tc * 4,
    )

    partials = pl.pallas_call(
        kernel,
        out_shape=jax.ShapeDtypeStruct((nb, fold_rows, tc), jnp.float32),
        grid=(nb, nc),
        in_specs=[pl.BlockSpec((tb, tc), lambda bi, ci: (bi, ci))],
        out_specs=pl.BlockSpec((1, fold_rows, tc), lambda bi, ci: (bi, 0, 0)),
        compiler_params=pltpu.CompilerParams(
            dimension_semantics=("parallel", "arbitrary")),
        cost_estimate=cost,
    )(inputs)

    # Positive-class correction in the wrapper (O(B) gather, per perf review):
    #   total = sum(logsigmoid(-x) + s*x) + (1 - 2s) * sum_b x[b, label_b]
    labels = targets.astype(jnp.int32).reshape(B, 1)
    pos = jnp.take_along_axis(inputs, labels, axis=1).astype(jnp.float32)
    total = jnp.sum(partials) + (1.0 - 2.0 * smoothing) * jnp.sum(pos)

    # Final scalar: divide by the *global* batch size, then negate.
    return -total / B


def _reference(inputs, targets, smoothing=0.1):
    """Pure-JAX reference mirroring the PyTorch module."""
    B, C = inputs.shape
    x = inputs.astype(jnp.float32)
    onehot = jax.nn.one_hot(targets, C, dtype=jnp.float32)
    tgt = onehot * (1.0 - smoothing) + (1.0 - onehot) * smoothing
    loss = tgt * jax.nn.log_sigmoid(x) + (1.0 - tgt) * jax.nn.log_sigmoid(-x)
    return -loss.sum(axis=-1).mean(axis=0)


if __name__ == "__main__":
    key = jax.random.PRNGKey(0)
    k_x, k_t, k_x2, k_t2 = jax.random.split(key, 4)
    smoothing = 0.1  # module __init__ default

    # Test 1: small aligned single-block case (f32).
    B, C = 8, 32
    inputs = jax.random.normal(k_x, (B, C), dtype=jnp.float32) * 2.0
    targets = jax.random.randint(k_t, (B,), 0, C, dtype=jnp.int32)
    out = jax.block_until_ready(
        binary_label_smooth_loss_with_logits(inputs, targets, smoothing))
    ref = _reference(inputs, targets, smoothing)
    assert jnp.allclose(out, ref, rtol=1e-5, atol=1e-5), (out, ref)

    # Test 2: multi-block grid + ragged row/col masking + split batch axis.
    B2, C2 = 20, 200
    inputs2 = jax.random.normal(k_x2, (B2, C2), dtype=jnp.float32) * 2.0
    targets2 = jax.random.randint(k_t2, (B2,), 0, C2, dtype=jnp.int32)
    out2 = jax.block_until_ready(
        binary_label_smooth_loss_with_logits(inputs2, targets2, smoothing,
                                             block_b=8, block_c=128))
    ref2 = _reference(inputs2, targets2, smoothing)
    assert jnp.allclose(out2, ref2, rtol=1e-5, atol=1e-5), (out2, ref2)

    # Test 3: bf16 logits consumed directly (no wrapper-side f32 HBM copy).
    inputs_bf16 = inputs.astype(jnp.bfloat16)
    out3 = jax.block_until_ready(
        binary_label_smooth_loss_with_logits(inputs_bf16, targets, smoothing))
    ref3 = _reference(inputs_bf16.astype(jnp.float32), targets, smoothing)
    assert jnp.allclose(out3, ref3, rtol=1e-4, atol=1e-4), (out3, ref3)

    print("KERNEL_OK")
</pallas_src>

<mosaic_0001>
module attributes {stable_mosaic.version = 11 : i64} {
  func.func @_bls_neg_kernel(%arg0: i32, %arg1: i32, %arg2: memref<8x32xf32, #tpu.memory_space<vmem>>, %arg3: memref<1x8x32xf32, #tpu.memory_space<vmem>>) attributes {dimension_semantics = [#tpu.dimension_semantics<parallel>, #tpu.dimension_semantics<arbitrary>], iteration_bounds = array<i64: 1, 1>, scalar_prefetch = 0 : i64, scratch_operands = 0 : i64, tpu.core_type = #tpu.core_type<tc>, window_params = [{transform_indices = @transform_0, window_bounds = array<i64: 8, 32>}, {transform_indices = @transform_1, window_bounds = array<i64: 1, 8, 32>}]} {
    %c0_i32 = arith.constant 0 : i32
    %0 = arith.cmpi eq, %arg1, %c0_i32 : i32
    %1 = arith.extui %0 : i1 to i32
    %c0_i32_0 = arith.constant 0 : i32
    %2 = arith.cmpi ne, %1, %c0_i32_0 : i32
    scf.if %2 {
      %cst_12 = arith.constant 0.000000e+00 : f32
      %23 = vector.broadcast %cst_12 : f32 to vector<1x8x32xf32>
      %c0_13 = arith.constant 0 : index
      %c0_14 = arith.constant 0 : index
      %c0_15 = arith.constant 0 : index
      %24 = vector.load %arg3[%c0_13, %c0_14, %c0_15] : memref<1x8x32xf32, #tpu.memory_space<vmem>>, vector<1x8x32xf32>
      tpu.vector_store %arg3[%c0_13, %c0_14, %c0_15], %23 {strides = array<i32>} : memref<1x8x32xf32, #tpu.memory_space<vmem>>, vector<1x8x32xf32>,
    } else {
    }
    %c0 = arith.constant 0 : index
    %c0_1 = arith.constant 0 : index
    %3 = vector.load %arg2[%c0, %c0_1] : memref<8x32xf32, #tpu.memory_space<vmem>>, vector<8x32xf32>
    %cst = arith.constant 0.000000e+00 : f32
    %4 = vector.broadcast %cst : f32 to vector<8x32xf32>
    %5 = arith.maximumf %3, %4 : vector<8x32xf32>
    %cst_2 = arith.constant 0.000000e+00 : f32
    %6 = vector.broadcast %cst_2 : f32 to vector<8x32xf32>
    %7 = arith.subf %6, %5 : vector<8x32xf32>
    %8 = math.absf %3 : vector<8x32xf32>
    %cst_3 = arith.constant 0.000000e+00 : f32
    %9 = vector.broadcast %cst_3 : f32 to vector<8x32xf32>
    %10 = arith.subf %9, %8 : vector<8x32xf32>
    %11 = math.exp %10 : vector<8x32xf32>
    %12 = math.log1p %11 : vector<8x32xf32>
    %13 = arith.subf %7, %12 : vector<8x32xf32>
    %cst_4 = arith.constant 1.000000e-01 : f32
    %14 = vector.broadcast %cst_4 : f32 to vector<8x32xf32>
    %15 = arith.mulf %14, %3 : vector<8x32xf32>
    %16 = arith.addf %13, %15 : vector<8x32xf32>
    %17 = vector.shape_cast %16 : vector<8x32xf32> to vector<1x8x32xf32>
    %cst_5 = arith.constant dense<0.000000e+00> : vector<8x32xf32>
    %18 = vector.multi_reduction <add>, %17, %cst_5 [0] : vector<1x8x32xf32> to vector<8x32xf32>
    %c0_6 = arith.constant 0 : index
    %c0_7 = arith.constant 0 : index
    %c0_8 = arith.constant 0 : index
    %19 = vector.load %arg3[%c0_6, %c0_7, %c0_8] : memref<1x8x32xf32, #tpu.memory_space<vmem>>, vector<1x8x32xf32>
    %20 = vector.shape_cast %18 : vector<8x32xf32> to vector<1x8x32xf32>
    %21 = arith.addf %19, %20 : vector<1x8x32xf32>
    %c0_9 = arith.constant 0 : index
    %c0_10 = arith.constant 0 : index
    %c0_11 = arith.constant 0 : index
    %22 = vector.load %arg3[%c0_9, %c0_10, %c0_11] : memref<1x8x32xf32, #tpu.memory_space<vmem>>, vector<1x8x32xf32>
    tpu.vector_store %arg3[%c0_9, %c0_10, %c0_11], %21 {strides = array<i32>} : memref<1x8x32xf32, #tpu.memory_space<vmem>>, vector<1x8x32xf32>,
    return
  }
  func.func @transform_0(%arg0: i32, %arg1: i32) -> (i32, i32) {
    %c0_i32 = arith.constant 0 : i32
    return %arg0, %arg1 : i32, i32
  }
  func.func @transform_1(%arg0: i32, %arg1: i32) -> (i32, i32, i32) {
    %c0_i32 = arith.constant 0 : i32
    %c0_i32_0 = arith.constant 0 : i32
    %c0_i32_1 = arith.constant 0 : i32
    return %arg0, %c0_i32, %c0_i32_0 : i32, i32, i32
  }
}

</mosaic_0001>

<llo_original>
// kernel: tpu_custom_call.1
$region0: #{tpu_custom_call.1}
  #allocation0 [shape = 'u32[]', space=smem, size = 0x4, offset = 0x4, fixed_abs, tag = 'smem constant byte address 0x4 - core index']
  #allocation1 [shape = 'u32[144,128]{1,0:T(1,128)}', space=vmem, size = 0x12000, scoped, tag = 'internal scratch']
  %s0 = inlined_call_operand.hbm [shape: f32[8,32], index: 0, kind: input, shape index: {}]
  %s1 = inlined_call_operand.hbm [shape: f32[1,8,32], index: 1, kind: output, shape index: {}]
  %s2 = sld [smem:[#allocation0]]
  $region22: #{tpu_custom_call.1} parent=0
    _
  %s4 = ssub.s32 1, %s2
  %s5 = scalar_select 0, %s4, %s2
  $region1: #{tpu_custom_call.1} parent=0
    #allocation2 [shape = 'u8[4096]{0}', space=vmem, size = 0x1000, scoped, tag = 'input window, operand 0, single buffered']
    #allocation3 [shape = 's32[1]{0}', space=sflag, size = 0x4, scoped, tag = 'scoped memory for tpu_custom_call.1']
    #allocation4 [shape = 's32[1]{0}', space=sflag, size = 0x4, scoped, tag = 'scoped memory for tpu_custom_call.1']
    #allocation5 [shape = 'u8[4096]{0}', space=vmem, size = 0x1000, scoped, tag = 'output window, operand 0, single buffered']
    %6 = vsyncpa [#allocation3], 0
    %7 = vsyncpa [#allocation4], 0
    // Predicated region
    $region2: #{tpu_custom_call.1} parent=1 // pred_check
      _
    $region3: #{tpu_custom_call.1} parent=1 // pred_check_branch
      %9 = sbr.rel (0) target = $region5
    $region4: #{tpu_custom_call.1} parent=1 // pred_region
      %s11 = ssub.s32 128, 128
      %12 = vsyncadd [#allocation3], %s11
      %s14 = sshll.u32 [#allocation2], 4
      %s15 = int_to_ptr.vmem [resolvable:$true] %s14
      %17 = dma.hbm_to_vmem [thread:$0]  %s0, 128, %s15, [#allocation3]
    $region5: #{tpu_custom_call.1} parent=1 // pred_fallthru
      _
    // Predicated region
    $region6: #{tpu_custom_call.1} parent=1 // pred_check
      _
    $region7: #{tpu_custom_call.1} parent=1 // pred_check_branch
      %19 = sbr.rel (0) target = $region9
    $region8: #{tpu_custom_call.1} parent=1 // pred_region
      %20 = dma.done [#allocation3], 128
    $region9: #{tpu_custom_call.1} parent=1 // pred_fallthru
      _
    %p21 = scmp.eq.s32.totalorder 0, 0
    // Predicated region
    $region10: #{tpu_custom_call.1} parent=1 // pred_check
      %p22 = pneg %p21
    $region11: #{tpu_custom_call.1} parent=1 // pred_check_branch
      %24 = sbr.rel (%p22) target = $region13
    $region12: #{tpu_custom_call.1} parent=1 // pred_region
      %vm25 = vcmask 261120
      %26 = vst.msk [vmem:[#allocation5] sm:$0xff] %vm25, 0.0
    $region13: #{tpu_custom_call.1} parent=1 // pred_fallthru
      _
    %v27 = vld [vmem:[#allocation2] sm:$0xff]
    %v28 = vmax.f32 %v27, 0.0
    %v29 = vsub.f32 0.0, %v28
    %v30 = vand.u32 2147483647, %v27
    %v31 = vsub.f32 0.0, %v30
    %v32 = vmul.f32 %v31, 1.442695
    %v33 = vpow.pop %v32
    %v34 = vadd.f32 %v33, 1.0
    %v35 = vlog2.pop %v34
    %v36 = vmul.f32 %v35, 0.6931472
    %v37 = vmul.f32 -0.5, %v33
    %v38 = vadd.f32 %v37, 1.0
    %v39 = vmul.f32 %v38, %v33
    %v40 = vand.u32 2147483647, %v33
    %vm41 = vcmp.lt.f32.partialorder %v40, 0.0004427343
    %v42 = vsel %vm41, %v39, %v36
    %v43 = vsub.f32 %v29, %v42
    %v44 = vmul.f32 %v27, 0.1
    %v45 = vadd.f32 %v43, %v44
    %v46 = vadd.f32 %v45, 0.0
    %v47 = vld [vmem:[#allocation5] sm:$0xff]
    %v48 = vadd.f32 %v47, %v46
    %vm49 = vcmask 261120
    %50 = vst.msk [vmem:[#allocation5] sm:$0xff] %vm49, %v48
    // Predicated region
    $region14: #{tpu_custom_call.1} parent=1 // pred_check
      _
    $region15: #{tpu_custom_call.1} parent=1 // pred_check_branch
      %52 = sbr.rel (0) target = $region17
    $region16: #{tpu_custom_call.1} parent=1 // pred_region
      %s54 = ssub.s32 128, 128
      %55 = vsyncadd [#allocation4], %s54
      %s57 = sshll.u32 [#allocation5], 4
      %s58 = int_to_ptr.vmem [resolvable:$true] %s57
      %60 = dma.vmem_to_hbm [thread:$0]  %s58, 128, %s1, [#allocation4]
    $region17: #{tpu_custom_call.1} parent=1 // pred_fallthru
      _
    // Predicated region
    $region18: #{tpu_custom_call.1} parent=1 // pred_check
      _
    $region19: #{tpu_custom_call.1} parent=1 // pred_check_branch
      %62 = sbr.rel (0) target = $region21
    $region20: #{tpu_custom_call.1} parent=1 // pred_region
      %63 = dma.done [#allocation4], 128
    $region21: #{tpu_custom_call.1} parent=1 // pred_fallthru
      _
    %64 = vsyncpa [#allocation3], 1
    %65 = vsyncpa [#allocation4], 1

</llo_original>
